<compile_context>
chip_gen: v7x
topology: tpu7x:2x2x1
jax: 0.10.0
libtpu: 0.0.40
codegen_flags: <defaults>
</compile_context>

<pallas_src>
from typing import NamedTuple

import jax
import jax.numpy as jnp
from jax.experimental import pallas as pl
from jax.experimental.pallas import tpu as pltpu


def _round_up(n, m):
    return ((n + m - 1) // m) * m


def _sublane(dtype):
    # Minimum sublane multiple for unmasked (sublane, 128) tiling.
    return 16 if jnp.dtype(dtype) == jnp.dtype(jnp.bfloat16) else 8


def _choose_tile_b_divisor(B, sub, cap, min_steps):
    """Largest tile_b dividing B, multiple of `sub`, <= cap, preferring >= min_steps steps."""
    best = None
    t = min(B, cap)
    t -= t % sub
    while t >= sub:
        if B % t == 0:
            if best is None:
                best = t
            if B // t >= min_steps:
                return t
        t -= sub
    return best if best is not None else sub


# ---------------------------------------------------------------------------
# Kernel: fused Linear -> ReLU -> Linear -> Sigmoid on one batch tile.
# ---------------------------------------------------------------------------
def dnn_kernel(x_ref, w1_ref, b1_ref, w2_ref, b2_ref, o_ref):
    x = x_ref[...]                                                    # (tile_b, F)
    h = jnp.dot(x, w1_ref[...], preferred_element_type=jnp.float32) + b1_ref[...]
    h = jnp.maximum(h, 0.0)                                           # ReLU(inplace=True) semantics
    z = jnp.dot(h.astype(w2_ref.dtype), w2_ref[...],
                preferred_element_type=jnp.float32) + b2_ref[...]
    o_ref[...] = jax.nn.sigmoid(z).astype(o_ref.dtype)


# ---------------------------------------------------------------------------
# One-time parameter preparation (init-time, NOT per forward call).
# ---------------------------------------------------------------------------
class DNNParams(NamedTuple):
    w1: jax.Array          # (F, H_pad)  pre-transposed, lane-dense padded
    b1: jax.Array          # (1, H_pad)  f32
    w2: jax.Array          # (H_pad, C_pad)
    b2: jax.Array          # (1, C_pad)  f32
    num_classes: int


def prepare_params(w1, b1, w2, b2, *, compute_dtype=jnp.float32):
    """Pad H/C up to multiples of 128 and cast MXU inputs once, at init time.

    Zero-padding is numerically exact: padded hidden columns see ReLU(0+0)=0 and
    the corresponding zero W2 rows contribute nothing to the logits.
    """
    F, H = w1.shape
    C = w2.shape[1]
    H_pad = _round_up(H, 128)
    C_pad = _round_up(C, 128)
    w1_p = jnp.zeros((F, H_pad), compute_dtype).at[:, :H].set(w1.astype(compute_dtype))
    b1_p = jnp.zeros((1, H_pad), jnp.float32).at[:, :H].set(
        jnp.reshape(b1, (1, H)).astype(jnp.float32))
    w2_p = jnp.zeros((H_pad, C_pad), compute_dtype).at[:H, :C].set(w2.astype(compute_dtype))
    b2_p = jnp.zeros((1, C_pad), jnp.float32).at[:, :C].set(
        jnp.reshape(b2, (1, C)).astype(jnp.float32))
    return DNNParams(w1_p, b1_p, w2_p, b2_p, C)


# ---------------------------------------------------------------------------
# Forward pass: sigmoid(relu(x @ W1 + b1) @ W2 + b2)
# ---------------------------------------------------------------------------
def dnn_forward(x, params: DNNParams, *, tile_b=None, min_grid_steps=1):
    """Fused forward. `min_grid_steps=2` keeps both v7x TensorCores busy for
    small/medium batches (neutral-to-slightly-worse on 1-TC v5e/v6e)."""
    B, F = x.shape
    w1_p, b1_p, w2_p, b2_p, C = params
    assert F == w1_p.shape[0], "feature dim mismatch vs prepared params"
    compute_dtype = w1_p.dtype
    H_pad = w1_p.shape[1]
    C_pad = w2_p.shape[1]
    sub = _sublane(compute_dtype)
    cap = 512   # multiple of 256: fills MXU rows, amortizes per-step overhead

    no_copy = (x.dtype == compute_dtype) and (B % sub == 0)
    if tile_b is not None:
        tile_b = _round_up(max(tile_b, sub), sub)
        B_pad = _round_up(B, tile_b)
        no_copy = no_copy and (B_pad == B)
    elif no_copy:
        tile_b = _choose_tile_b_divisor(B, sub, cap, min_grid_steps)
        B_pad = B
    else:
        tile_b = max(min(_round_up(-(-B // max(min_grid_steps, 1)), sub), cap), sub)
        B_pad = _round_up(B, tile_b)

    if no_copy and B_pad == B:
        x_p = x                                   # no HBM copy of x at all
    else:
        # TODO(synk): mask the ragged last tile in-kernel instead of padding.
        x_p = jnp.zeros((B_pad, F), compute_dtype).at[:B, :].set(x.astype(compute_dtype))

    cd = jnp.dtype(compute_dtype).itemsize
    # Advisory cost for the XLA scheduler (lets it overlap surrounding ops).
    cost = pl.CostEstimate(
        flops=2 * B_pad * (F * H_pad + H_pad * C_pad),
        transcendentals=B_pad * C_pad,            # sigmoid exp
        bytes_accessed=(B_pad * F * cd + F * H_pad * cd + H_pad * C_pad * cd
                        + (H_pad + C_pad) * 4 + B_pad * C_pad * 4),
    )

    # Default double-buffering on every operand; raise scoped VMEM only if the
    # resident buffers need it (leave the default limit otherwise).
    vmem_need = 2 * (tile_b * F * cd + F * H_pad * cd + H_pad * 4
                     + H_pad * C_pad * cd + C_pad * 4 + tile_b * C_pad * 4)
    vmem_limit = int(min(vmem_need * 2, 100 << 20)) if vmem_need > (16 << 20) else None

    grid = (B_pad // tile_b,)
    out_padded = pl.pallas_call(
        dnn_kernel,
        out_shape=jax.ShapeDtypeStruct((B_pad, C_pad), jnp.float32),
        grid_spec=pltpu.PrefetchScalarGridSpec(
            num_scalar_prefetch=0,
            grid=grid,
            in_specs=[
                pl.BlockSpec((tile_b, F), lambda i: (i, 0)),      # x tile
                pl.BlockSpec((F, H_pad), lambda i: (0, 0)),       # W1 (resident)
                pl.BlockSpec((1, H_pad), lambda i: (0, 0)),       # b1
                pl.BlockSpec((H_pad, C_pad), lambda i: (0, 0)),   # W2 (resident)
                pl.BlockSpec((1, C_pad), lambda i: (0, 0)),       # b2
            ],
            out_specs=pl.BlockSpec((tile_b, C_pad), lambda i: (i, 0)),
        ),
        compiler_params=pltpu.CompilerParams(
            dimension_semantics=("parallel",),
            vmem_limit_bytes=vmem_limit,
        ),
        cost_estimate=cost,
    )(x_p, w1_p, b1_p, w2_p, b2_p)

    return out_padded[:B, :C]


# ---------------------------------------------------------------------------
# Init + pure-JAX reference (matches the PyTorch module semantics).
# ---------------------------------------------------------------------------
def init_params(key, feature_num, num_classes=2):
    """nn.Linear-style uniform(-1/sqrt(fan_in), 1/sqrt(fan_in)) init; weights
    stored pre-transposed (in_features, out_features)."""
    hidden = feature_num - 2
    k1, k2, k3, k4 = jax.random.split(key, 4)
    bound1 = 1.0 / jnp.sqrt(feature_num)
    bound2 = 1.0 / jnp.sqrt(hidden)
    w1 = jax.random.uniform(k1, (feature_num, hidden), jnp.float32, -bound1, bound1)
    b1 = jax.random.uniform(k2, (1, hidden), jnp.float32, -bound1, bound1)
    w2 = jax.random.uniform(k3, (hidden, num_classes), jnp.float32, -bound2, bound2)
    b2 = jax.random.uniform(k4, (1, num_classes), jnp.float32, -bound2, bound2)
    return w1, b1, w2, b2


def dnn_reference(x, w1, b1, w2, b2):
    h = jnp.maximum(x @ w1 + b1, 0.0)
    return jax.nn.sigmoid(h @ w2 + b2)


if __name__ == "__main__":
    batch = 16
    feature_num = 32
    num_classes = 2

    key = jax.random.PRNGKey(0)
    kx, kp = jax.random.split(key)
    x = jax.random.normal(kx, (batch, feature_num), jnp.float32)
    w1, b1, w2, b2 = init_params(kp, feature_num, num_classes)

    ref = dnn_reference(x, w1, b1, w2, b2)

    # --- f32 exact path; weight padding done once here (init time) -----------
    params_f32 = prepare_params(w1, b1, w2, b2, compute_dtype=jnp.float32)
    out = jax.block_until_ready(dnn_forward(x, params_f32))
    assert out.shape == (batch, num_classes)
    assert jnp.allclose(out, ref, atol=1e-5, rtol=1e-5), "f32 mismatch vs reference"

    # --- bf16 MXU fast path (all generations, incl. v5e); f32 accum/epilogue --
    params_bf16 = prepare_params(w1, b1, w2, b2, compute_dtype=jnp.bfloat16)
    out_bf16 = jax.block_until_ready(dnn_forward(x, params_bf16))
    assert out_bf16.shape == (batch, num_classes)
    assert jnp.allclose(out_bf16, ref, atol=3e-2, rtol=3e-2), "bf16 mismatch vs reference"

    # --- ragged batch (exercises the padded-x fallback path) -----------------
    xr = jax.random.normal(kx, (20, feature_num), jnp.float32)
    out_r = jax.block_until_ready(dnn_forward(xr, params_f32))
    assert out_r.shape == (20, num_classes)
    assert jnp.allclose(out_r, dnn_reference(xr, w1, b1, w2, b2), atol=1e-5, rtol=1e-5)

    # --- v7x-style split: >=2 "parallel" grid steps, no x copy ---------------
    x2 = jax.random.normal(kx, (32, feature_num), jnp.float32)
    out_2 = jax.block_until_ready(dnn_forward(x2, params_f32, min_grid_steps=2))
    assert out_2.shape == (32, num_classes)
    assert jnp.allclose(out_2, dnn_reference(x2, w1, b1, w2, b2), atol=1e-5, rtol=1e-5)

    print("KERNEL_OK")
</pallas_src>

<mosaic_0001>
module attributes {stable_mosaic.version = 11 : i64} {
  func.func @dnn_kernel(%arg0: i32, %arg1: memref<16x32xf32, #tpu.memory_space<vmem>>, %arg2: memref<32x128xf32, #tpu.memory_space<vmem>>, %arg3: memref<1x128xf32, #tpu.memory_space<vmem>>, %arg4: memref<128x128xf32, #tpu.memory_space<vmem>>, %arg5: memref<1x128xf32, #tpu.memory_space<vmem>>, %arg6: memref<16x128xf32, #tpu.memory_space<vmem>>) attributes {dimension_semantics = [#tpu.dimension_semantics<parallel>], iteration_bounds = array<i64: 1>, scalar_prefetch = 0 : i64, scratch_operands = 0 : i64, tpu.core_type = #tpu.core_type<tc>, window_params = [{transform_indices = @transform_0, window_bounds = array<i64: 16, 32>}, {pipeline_mode = #tpu.pipeline_mode<synchronous>, transform_indices = @transform_1, window_bounds = array<i64: 32, 128>}, {pipeline_mode = #tpu.pipeline_mode<synchronous>, transform_indices = @transform_2, window_bounds = array<i64: 1, 128>}, {pipeline_mode = #tpu.pipeline_mode<synchronous>, transform_indices = @transform_3, window_bounds = array<i64: 128, 128>}, {pipeline_mode = #tpu.pipeline_mode<synchronous>, transform_indices = @transform_4, window_bounds = array<i64: 1, 128>}, {transform_indices = @transform_5, window_bounds = array<i64: 16, 128>}]} {
    %c0 = arith.constant 0 : index
    %c0_0 = arith.constant 0 : index
    %0 = vector.load %arg1[%c0, %c0_0] : memref<16x32xf32, #tpu.memory_space<vmem>>, vector<16x32xf32>
    %c0_1 = arith.constant 0 : index
    %c0_2 = arith.constant 0 : index
    %1 = vector.load %arg2[%c0_1, %c0_2] : memref<32x128xf32, #tpu.memory_space<vmem>>, vector<32x128xf32>
    %cst = arith.constant dense<0.000000e+00> : vector<16x128xf32>
    %2 = tpu.matmul %0, %1, %cst {dimension_numbers = #tpu.dot_dimension_numbers<[1], [0], [0], [1], [0, 0, 1, 1], [], []>} : vector<16x32xf32>, vector<32x128xf32>, vector<16x128xf32> -> vector<16x128xf32>
    %c0_3 = arith.constant 0 : index
    %c0_4 = arith.constant 0 : index
    %3 = vector.load %arg3[%c0_3, %c0_4] : memref<1x128xf32, #tpu.memory_space<vmem>>, vector<1x128xf32>
    %4 = vector.broadcast %3 : vector<1x128xf32> to vector<16x128xf32>
    %5 = arith.addf %2, %4 : vector<16x128xf32>
    %cst_5 = arith.constant 0.000000e+00 : f32
    %6 = vector.broadcast %cst_5 : f32 to vector<16x128xf32>
    %7 = arith.maximumf %5, %6 : vector<16x128xf32>
    %c0_6 = arith.constant 0 : index
    %c0_7 = arith.constant 0 : index
    %8 = vector.load %arg4[%c0_6, %c0_7] : memref<128x128xf32, #tpu.memory_space<vmem>>, vector<128x128xf32>
    %cst_8 = arith.constant dense<0.000000e+00> : vector<16x128xf32>
    %9 = tpu.matmul %7, %8, %cst_8 {dimension_numbers = #tpu.dot_dimension_numbers<[1], [0], [0], [1], [0, 0, 1, 1], [], []>} : vector<16x128xf32>, vector<128x128xf32>, vector<16x128xf32> -> vector<16x128xf32>
    %c0_9 = arith.constant 0 : index
    %c0_10 = arith.constant 0 : index
    %10 = vector.load %arg5[%c0_9, %c0_10] : memref<1x128xf32, #tpu.memory_space<vmem>>, vector<1x128xf32>
    %11 = vector.broadcast %10 : vector<1x128xf32> to vector<16x128xf32>
    %12 = arith.addf %9, %11 : vector<16x128xf32>
    %13 = arith.negf %12 : vector<16x128xf32>
    %14 = math.exp %13 : vector<16x128xf32>
    %cst_11 = arith.constant 1.000000e+00 : f32
    %15 = vector.broadcast %cst_11 : f32 to vector<16x128xf32>
    %16 = arith.addf %15, %14 : vector<16x128xf32>
    %17 = arith.divf %15, %16 : vector<16x128xf32>
    %c0_12 = arith.constant 0 : index
    %c0_13 = arith.constant 0 : index
    %18 = vector.load %arg6[%c0_12, %c0_13] : memref<16x128xf32, #tpu.memory_space<vmem>>, vector<16x128xf32>
    tpu.vector_store %arg6[%c0_12, %c0_13], %17 {strides = array<i32>} : memref<16x128xf32, #tpu.memory_space<vmem>>, vector<16x128xf32>,
    return
  }
  func.func @transform_0(%arg0: i32) -> (i32, i32) {
    %c0_i32 = arith.constant 0 : i32
    %c0_i32_0 = arith.constant 0 : i32
    return %arg0, %c0_i32 : i32, i32
  }
  func.func @transform_1(%arg0: i32) -> (i32, i32) {
    %c0_i32 = arith.constant 0 : i32
    %c0_i32_0 = arith.constant 0 : i32
    %c0_i32_1 = arith.constant 0 : i32
    return %c0_i32, %c0_i32_0 : i32, i32
  }
  func.func @transform_2(%arg0: i32) -> (i32, i32) {
    %c0_i32 = arith.constant 0 : i32
    %c0_i32_0 = arith.constant 0 : i32
    %c0_i32_1 = arith.constant 0 : i32
    return %c0_i32, %c0_i32_0 : i32, i32
  }
  func.func @transform_3(%arg0: i32) -> (i32, i32) {
    %c0_i32 = arith.constant 0 : i32
    %c0_i32_0 = arith.constant 0 : i32
    %c0_i32_1 = arith.constant 0 : i32
    return %c0_i32, %c0_i32_0 : i32, i32
  }
  func.func @transform_4(%arg0: i32) -> (i32, i32) {
    %c0_i32 = arith.constant 0 : i32
    %c0_i32_0 = arith.constant 0 : i32
    %c0_i32_1 = arith.constant 0 : i32
    return %c0_i32, %c0_i32_0 : i32, i32
  }
  func.func @transform_5(%arg0: i32) -> (i32, i32) {
    %c0_i32 = arith.constant 0 : i32
    %c0_i32_0 = arith.constant 0 : i32
    return %arg0, %c0_i32 : i32, i32
  }
}

</mosaic_0001>

<llo_original>
// kernel: tpu_custom_call.1
$region0: #{tpu_custom_call.1}
  #allocation0 [shape = 'u32[]', space=smem, size = 0x4, offset = 0x4, fixed_abs, tag = 'smem constant byte address 0x4 - core index']
  #allocation1 [shape = 'u32[144,128]{1,0:T(1,128)}', space=vmem, size = 0x12000, scoped, tag = 'internal scratch']
  %s0 = inlined_call_operand.hbm [shape: f32[16,32], index: 0, kind: input, shape index: {}]
  %s1 = inlined_call_operand.hbm [shape: f32[32,128], index: 1, kind: input, shape index: {}]
  %s2 = inlined_call_operand.vmem [shape: f32[1,128], index: 2, kind: input, shape index: {}]
  %s3 = inlined_call_operand.hbm [shape: f32[128,128], index: 3, kind: input, shape index: {}]
  %s4 = inlined_call_operand.vmem [shape: f32[1,128], index: 4, kind: input, shape index: {}]
  %s5 = inlined_call_operand.hbm [shape: f32[16,128], index: 5, kind: output, shape index: {}]
  %s6 = sld [smem:[#allocation0]]
  $region42: #{tpu_custom_call.1} parent=0
    _
  %s8 = ssub.s32 1, %s6
  %s9 = scalar_select 0, %s8, %s6
  $region1: #{tpu_custom_call.1} parent=0
    #allocation2 [shape = 'u8[8192]{0}', space=vmem, size = 0x2000, scoped, tag = 'input window, operand 0, single buffered']
    #allocation3 [shape = 's32[1]{0}', space=sflag, size = 0x4, scoped, tag = 'scoped memory for tpu_custom_call.1']
    #allocation4 [shape = 's32[1]{0}', space=sflag, size = 0x4, scoped, tag = 'scoped memory for tpu_custom_call.1']
    #allocation5 [shape = 'u8[16384]{0}', space=vmem, size = 0x4000, scoped, tag = 'input window, operand 1, single buffered']
    #allocation6 [shape = 's32[1]{0}', space=sflag, size = 0x4, scoped, tag = 'scoped memory for tpu_custom_call.1']
    #allocation7 [shape = 'u8[65536]{0}', space=vmem, size = 0x10000, scoped, tag = 'input window, operand 3, single buffered']
    #allocation8 [shape = 'u8[8192]{0}', space=vmem, size = 0x2000, scoped, tag = 'output window, operand 0, single buffered']
    %10 = vsyncpa [#allocation3], 0
    %11 = vsyncpa [#allocation6], 0
    %12 = vsyncpa [#allocation4], 0
    // Predicated region
    $region2: #{tpu_custom_call.1} parent=1 // pred_check
      _
    $region3: #{tpu_custom_call.1} parent=1 // pred_check_branch
      %14 = sbr.rel (0) target = $region5
    $region4: #{tpu_custom_call.1} parent=1 // pred_region
      %s16 = ssub.s32 256, 256
      %17 = vsyncadd [#allocation3], %s16
      %s18 = sshll.u32 [#allocation2], 4
      %s19 = int_to_ptr.vmem [resolvable:$true] %s18
      %24 = dma.hbm_to_vmem [thread:$0]  %s0, 256, %s19, [#allocation3], 128, 128, 8
    $region5: #{tpu_custom_call.1} parent=1 // pred_fallthru
      _
    // Predicated region
    $region6: #{tpu_custom_call.1} parent=1 // pred_check
      _
    $region7: #{tpu_custom_call.1} parent=1 // pred_check_branch
      %26 = sbr.rel (0) target = $region9
    $region8: #{tpu_custom_call.1} parent=1 // pred_region
      %s28 = ssub.s32 512, 512
      %29 = vsyncadd [#allocation6], %s28
      %s30 = sshll.u32 [#allocation5], 4
      %s31 = int_to_ptr.vmem [resolvable:$true] %s30
      %36 = dma.hbm_to_vmem [thread:$0]  %s1, 512, %s31, [#allocation6], 128, 128, 8
    $region9: #{tpu_custom_call.1} parent=1 // pred_fallthru
      _
    // Predicated region
    $region10: #{tpu_custom_call.1} parent=1 // pred_check
      _
    $region11: #{tpu_custom_call.1} parent=1 // pred_check_branch
      %38 = sbr.rel (0) target = $region13
    $region12: #{tpu_custom_call.1} parent=1 // pred_region
      _
    $region13: #{tpu_custom_call.1} parent=1 // pred_fallthru
      _
    // Predicated region
    $region14: #{tpu_custom_call.1} parent=1 // pred_check
      _
    $region15: #{tpu_custom_call.1} parent=1 // pred_check_branch
      %40 = sbr.rel (0) target = $region17
    $region16: #{tpu_custom_call.1} parent=1 // pred_region
      %s42 = ssub.s32 2048, 2048
      %43 = vsyncadd [#allocation6], %s42
      %s44 = sshll.u32 [#allocation7], 4
      %s45 = int_to_ptr.vmem [resolvable:$true] %s44
      %50 = dma.hbm_to_vmem [thread:$0]  %s3, 2048, %s45, [#allocation6], 128, 128, 8
    $region17: #{tpu_custom_call.1} parent=1 // pred_fallthru
      _
    // Predicated region
    $region18: #{tpu_custom_call.1} parent=1 // pred_check
      _
    $region19: #{tpu_custom_call.1} parent=1 // pred_check_branch
      %52 = sbr.rel (0) target = $region21
    $region20: #{tpu_custom_call.1} parent=1 // pred_region
      _
    $region21: #{tpu_custom_call.1} parent=1 // pred_fallthru
      _
    // Predicated region
    $region22: #{tpu_custom_call.1} parent=1 // pred_check
      _
    $region23: #{tpu_custom_call.1} parent=1 // pred_check_branch
      %54 = sbr.rel (0) target = $region25
    $region24: #{tpu_custom_call.1} parent=1 // pred_region
      %55 = dma.done [#allocation3], 256
    $region25: #{tpu_custom_call.1} parent=1 // pred_fallthru
      _
    // Predicated region
    $region26: #{tpu_custom_call.1} parent=1 // pred_check
      _
    $region27: #{tpu_custom_call.1} parent=1 // pred_check_branch
      %57 = sbr.rel (0) target = $region29
    $region28: #{tpu_custom_call.1} parent=1 // pred_region
      %58 = dma.done [#allocation6], 512
    $region29: #{tpu_custom_call.1} parent=1 // pred_fallthru
      _
    // Predicated region
    $region30: #{tpu_custom_call.1} parent=1 // pred_check
      _
    $region31: #{tpu_custom_call.1} parent=1 // pred_check_branch
      %60 = sbr.rel (0) target = $region33
    $region32: #{tpu_custom_call.1} parent=1 // pred_region
      %61 = dma.done [#allocation6], 2048
    $region33: #{tpu_custom_call.1} parent=1 // pred_fallthru
      _
    %v62 = vld [vmem:[#allocation2] sm:$0xff]
    %v63 = vld [vmem:[#allocation2 + $0x8] sm:$0xff]
    %v64 = vld [vmem:[#allocation5] sm:$0xff]
    %v65 = vld [vmem:[#allocation5 + $0x8] sm:$0xff]
    %v66 = vld [vmem:[#allocation5 + $0x10] sm:$0xff]
    %v67 = vld [vmem:[#allocation5 + $0x18] sm:$0xff]
    %v68 = vld [vmem:[%s2] sm:$0x1]
    %v70 = vlaneseq
    %v71 = vshrl.u32 %v70, 7
    %v72 = vsub.s32 0, %v71
    %v73 = vrot.slane %v68, %v72
    %vm75 = vcmask 261120
    %v77 = vsel %vm75, %v62, 0
    %v80 = vsel %vm75, %v63, 0
    %82 = vmatprep.subr.mxu0 0.0
    %83 = vmatpush1.msra.mxu0 %v64
    %84 = vmatprep.subr.mxu0 0.0
    %85 = vmatpush1.msra.mxu0 %v65
    %86 = vmatprep.subr.mxu0 0.0
    %87 = vmatpush1.msra.mxu0 %v66
    %88 = vmatprep.subr.mxu0 0.0
    %89 = vmatpush1.msra.mxu0 %v67
    %90 = vmatprep.subr.mxu0 0.0
    %91 = vmatpush1.msra.mxu0 0.0
    %92 = vmatprep.subr.mxu0 0.0
    %93 = vmatpush1.msra.mxu0 0.0
    %94 = vmatprep.subr.mxu0 0.0
    %95 = vmatpush1.msra.mxu0 0.0
    %96 = vmatprep.subr.mxu0 0.0
    %97 = vmatpush1.msra.mxu0 0.0
    %98 = vmatprep.subr.mxu0 0.0
    %99 = vmatpush1.msra.mxu0 0.0
    %100 = vmatprep.subr.mxu0 0.0
    %101 = vmatpush1.msra.mxu0 0.0
    %102 = vmatprep.subr.mxu0 0.0
    %103 = vmatpush1.msra.mxu0 0.0
    %104 = vmatprep.subr.mxu0 0.0
    %105 = vmatpush1.msra.mxu0 0.0
    %106 = vmatprep.subr.mxu0 0.0
    %107 = vmatpush1.msra.mxu0 0.0
    %108 = vmatprep.subr.mxu0 0.0
    %109 = vmatpush1.msra.mxu0 0.0
    %110 = vmatprep.subr.mxu0 0.0
    %111 = vmatpush1.msra.mxu0 0.0
    %112 = vmatprep.subr.mxu0 0.0
    %113 = vmatpush1.msra.mxu0 0.0
    %114 = vmatprep.subr.mxu0 0.0
    %115 = vmatpush1.msra.mxu0 0.0
    %116 = vmatprep.subr.mxu0 0.0
    %117 = vmatpush1.msra.mxu0 0.0
    %118 = vmatprep.subr.mxu0 0.0
    %119 = vmatpush1.msra.mxu0 0.0
    %120 = vmatprep.subr.mxu0 0.0
    %121 = vmatpush1.msra.mxu0 0.0
    %122 = vmatprep.subr.mxu0 0.0
    %123 = vmatpush1.msra.mxu0 0.0
    %124 = vmatprep.subr.mxu0 0.0
    %125 = vmatpush1.msra.mxu0 0.0
    %126 = vmatprep.subr.mxu0 0.0
    %127 = vmatpush1.msra.mxu0 0.0
    %128 = vmatprep.subr.mxu0 0.0
    %129 = vmatpush1.msra.mxu0 0.0
    %130 = vmatprep.subr.mxu0 0.0
    %131 = vmatpush1.msra.mxu0 0.0
    %132 = vmatprep.subr.mxu0 0.0
    %133 = vmatpush1.msra.mxu0 0.0
    %134 = vmatprep.subr.mxu0 0.0
    %135 = vmatpush1.msra.mxu0 0.0
    %136 = vmatprep.subr.mxu0 0.0
    %137 = vmatpush1.msra.mxu0 0.0
    %138 = vmatprep.subr.mxu0 0.0
    %139 = vmatpush1.msra.mxu0 0.0
    %140 = vmatprep.subr.mxu0 0.0
    %141 = vmatpush1.msra.mxu0 0.0
    %142 = vmatprep.subr.mxu0 0.0
    %143 = vmatpush1.msra.mxu0 0.0
    %144 = vmatprep.subr.mxu0 0.0
    %145 = vmatpush1.msra.mxu0 0.0
    %146 = vmatprep.mubr.f32.mxu0 0.0
    %147 = vmatmul.mubr.f32.gmra.mrb[0].mxu0 %v77
    %v148 = vpop.f32.mrb[0].mxu0
    %v149 = vadd.f32 %v73, %v148
    %v150 = vpop.f32.mrb[0].mxu0
    %151 = vmatprep.mubr.f32.mxu0 0.0
    %152 = vmatmul.mubr.f32.gmra.mrb[0].mxu0 %v80
    %v153 = vpop.f32.mrb[0].mxu0
    %v154 = vadd.f32 %v73, %v153
    %v155 = vpop.f32.mrb[0].mxu0
    %156 = vdwg.mxu0
    %v157 = vmax.f32 %v149, 0.0
    %v158 = vmax.f32 %v154, 0.0
    %v159 = vld [vmem:[#allocation7] sm:$0xff]
    %v160 = vld [vmem:[#allocation7 + $0x8] sm:$0xff]
    %v161 = vld [vmem:[#allocation7 + $0x10] sm:$0xff]
    %v162 = vld [vmem:[#allocation7 + $0x18] sm:$0xff]
    %v163 = vld [vmem:[#allocation7 + $0x20] sm:$0xff]
    %v164 = vld [vmem:[#allocation7 + $0x28] sm:$0xff]
    %v165 = vld [vmem:[#allocation7 + $0x30] sm:$0xff]
    %v166 = vld [vmem:[#allocation7 + $0x38] sm:$0xff]
    %v167 = vld [vmem:[#allocation7 + $0x40] sm:$0xff]
    %v168 = vld [vmem:[#allocation7 + $0x48] sm:$0xff]
    %v169 = vld [vmem:[#allocation7 + $0x50] sm:$0xff]
    %v170 = vld [vmem:[#allocation7 + $0x58] sm:$0xff]
    %v171 = vld [vmem:[#allocation7 + $0x60] sm:$0xff]
    %v172 = vld [vmem:[#allocation7 + $0x68] sm:$0xff]
    %v173 = vld [vmem:[#allocation7 + $0x70] sm:$0xff]
    %v174 = vld [vmem:[#allocation7 + $0x78] sm:$0xff]
    %v175 = vld [vmem:[%s4] sm:$0x1]
    %v177 = vlaneseq
    %v178 = vshrl.u32 %v177, 7
    %v179 = vsub.s32 0, %v178
    %v180 = vrot.slane %v175, %v179
    %182 = vmatprep.subr.mxu0 0.0
    %183 = vmatpush1.msra.mxu0 %v159
    %184 = vmatprep.subr.mxu0 0.0
    %185 = vmatpush1.msra.mxu0 %v160
    %186 = vmatprep.subr.mxu0 0.0
    %187 = vmatpush1.msra.mxu0 %v161
    %188 = vmatprep.subr.mxu0 0.0
    %189 = vmatpush1.msra.mxu0 %v162
    %190 = vmatprep.subr.mxu0 0.0
    %191 = vmatpush1.msra.mxu0 %v163
    %192 = vmatprep.subr.mxu0 0.0
    %193 = vmatpush1.msra.mxu0 %v164
    %194 = vmatprep.subr.mxu0 0.0
    %195 = vmatpush1.msra.mxu0 %v165
    %196 = vmatprep.subr.mxu0 0.0
    %197 = vmatpush1.msra.mxu0 %v166
    %198 = vmatprep.subr.mxu0 0.0
    %199 = vmatpush1.msra.mxu0 %v167
    %200 = vmatprep.subr.mxu0 0.0
    %201 = vmatpush1.msra.mxu0 %v168
    %202 = vmatprep.subr.mxu0 0.0
    %203 = vmatpush1.msra.mxu0 %v169
    %204 = vmatprep.subr.mxu0 0.0
    %205 = vmatpush1.msra.mxu0 %v170
    %206 = vmatprep.subr.mxu0 0.0
    %207 = vmatpush1.msra.mxu0 %v171
    %208 = vmatprep.subr.mxu0 0.0
    %209 = vmatpush1.msra.mxu0 %v172
    %210 = vmatprep.subr.mxu0 0.0
    %211 = vmatpush1.msra.mxu0 %v173
    %212 = vmatprep.subr.mxu0 0.0
    %213 = vmatpush1.msra.mxu0 %v174
    %214 = vmatprep.subr.mxu0 0.0
    %215 = vmatpush1.msra.mxu0 0.0
    %216 = vmatprep.subr.mxu0 0.0
    %217 = vmatpush1.msra.mxu0 0.0
    %218 = vmatprep.subr.mxu0 0.0
    %219 = vmatpush1.msra.mxu0 0.0
    %220 = vmatprep.subr.mxu0 0.0
    %221 = vmatpush1.msra.mxu0 0.0
    %222 = vmatprep.subr.mxu0 0.0
    %223 = vmatpush1.msra.mxu0 0.0
    %224 = vmatprep.subr.mxu0 0.0
    %225 = vmatpush1.msra.mxu0 0.0
    %226 = vmatprep.subr.mxu0 0.0
    %227 = vmatpush1.msra.mxu0 0.0
    %228 = vmatprep.subr.mxu0 0.0
    %229 = vmatpush1.msra.mxu0 0.0
    %230 = vmatprep.subr.mxu0 0.0
    %231 = vmatpush1.msra.mxu0 0.0
    %232 = vmatprep.subr.mxu0 0.0
    %233 = vmatpush1.msra.mxu0 0.0
    %234 = vmatprep.subr.mxu0 0.0
    %235 = vmatpush1.msra.mxu0 0.0
    %236 = vmatprep.subr.mxu0 0.0
    %237 = vmatpush1.msra.mxu0 0.0
    %238 = vmatprep.subr.mxu0 0.0
    %239 = vmatpush1.msra.mxu0 0.0
    %240 = vmatprep.subr.mxu0 0.0
    %241 = vmatpush1.msra.mxu0 0.0
    %242 = vmatprep.subr.mxu0 0.0
    %243 = vmatpush1.msra.mxu0 0.0
    %244 = vmatprep.subr.mxu0 0.0
    %245 = vmatpush1.msra.mxu0 0.0
    %246 = vmatprep.mubr.f32.mxu0 0.0
    %247 = vmatmul.mubr.f32.gmra.mrb[0].mxu0 %v157
    %v248 = vpop.f32.mrb[0].mxu0
    %v249 = vadd.f32 %v180, %v248
    %v250 = vpop.f32.mrb[0].mxu0
    %251 = vmatprep.mubr.f32.mxu0 0.0
    %252 = vmatmul.mubr.f32.gmra.mrb[0].mxu0 %v158
    %v253 = vpop.f32.mrb[0].mxu0
    %v254 = vadd.f32 %v180, %v253
    %v255 = vpop.f32.mrb[0].mxu0
    %256 = vdwg.mxu0
    %v257 = vxor.u32 %v249, 2147483648
    %v258 = vxor.u32 %v254, 2147483648
    %v259 = vmul.f32 %v257, 1.442695
    %v260 = vpow.pop %v259
    %v261 = vmul.f32 %v258, 1.442695
    %v262 = vpow.pop %v261
    %v263 = vadd.f32 %v260, 1.0
    %v264 = vadd.f32 %v262, 1.0
    %v265 = vrcp.pop %v263
    %v266 = vmul.f32 1.0, %v265
    %v267 = vrcp.pop %v264
    %v268 = vmul.f32 1.0, %v267
    %269 = vst [vmem:[#allocation8] sm:$0xff] %v266
    %270 = vst [vmem:[#allocation8 + $0x8] sm:$0xff] %v268
    // Predicated region
    $region34: #{tpu_custom_call.1} parent=1 // pred_check
      _
    $region35: #{tpu_custom_call.1} parent=1 // pred_check_branch
      %272 = sbr.rel (0) target = $region37
    $region36: #{tpu_custom_call.1} parent=1 // pred_region
      %s274 = ssub.s32 256, 256
      %275 = vsyncadd [#allocation4], %s274
      %s276 = sshll.u32 [#allocation8], 4
      %s277 = int_to_ptr.vmem [resolvable:$true] %s276
      %282 = dma.vmem_to_hbm [thread:$0]  %s277, 256, %s5, [#allocation4], 128, 128, 8
    $region37: #{tpu_custom_call.1} parent=1 // pred_fallthru
      _
    // Predicated region
    $region38: #{tpu_custom_call.1} parent=1 // pred_check
      _
    $region39: #{tpu_custom_call.1} parent=1 // pred_check_branch
      %284 = sbr.rel (0) target = $region41
    $region40: #{tpu_custom_call.1} parent=1 // pred_region
      %285 = dma.done [#allocation4], 256
    $region41: #{tpu_custom_call.1} parent=1 // pred_fallthru
      _
    %286 = vsyncpa [#allocation3], 1
    %287 = vsyncpa [#allocation6], 1
    %288 = vsyncpa [#allocation4], 1

</llo_original>
